<compile_context>
chip_gen: v7x
topology: tpu7x:2x2x1
jax: 0.10.0
libtpu: 0.0.40
codegen_flags: <defaults>
</compile_context>

<pallas_src>
import numpy as np
import jax
import jax.numpy as jnp
from jax.experimental import pallas as pl
from jax.experimental.pallas import tpu as pltpu


_MAX_TILE_ELEMS = 128 * 1024   # spatial elems per grid step (~0.5 MiB depth + 2 MiB out)
_MIN_TILES_PER_IMAGE = 4       # v7x: 2 TensorCores + DMA pipeline need >1 step


def _choose_tile_h(height, width):
    """Rows per spatial tile: multiple of 8 (sublane layout), elems <= ~128K (VMEM),
    and (when H allows) >= _MIN_TILES_PER_IMAGE tiles per image (v7x megacore)."""
    if height <= 8:
        return height                                  # full extent: always layout-legal
    max_rows = max(8, (_MAX_TILE_ELEMS // max(width, 1)) // 8 * 8)
    th = max(8, min((height // 8) * 8, max_rows))
    while th > 8 and -(-height // th) < _MIN_TILES_PER_IMAGE:
        th = max(8, ((th // 2) // 8) * 8)
    # Prefer an exact divisor of H (avoids a ragged, masked last block).
    for cand in range(th, 7, -8):
        if height % cand == 0:
            return cand
    return th                                          # ragged last tile: OOB writes masked


def _backproject_kernel(params_ref, depth_ref, out_ref):
    # grid = (B, num_row_tiles); one (4, TH, W) output slab per step.
    b = pl.program_id(0)
    t = pl.program_id(1)

    depth = depth_ref[0, 0]                            # (TH, W) f32, sublane-dense
    th, w = depth.shape

    # Pixel coordinates from the tile position: no div/floor/mod, int32-exact.
    x = jax.lax.broadcasted_iota(jnp.int32, (th, w), 1).astype(jnp.float32)
    y = (jax.lax.broadcasted_iota(jnp.int32, (th, w), 0) + t * th).astype(jnp.float32)

    # out[r] = depth * (P[r,0]*x + P[r,1]*y + P[r,2]) + P[r,3]  (rows unrolled,
    # coefficients read as SMEM scalars -> scalar*vector VPU ops).
    for r in range(4):
        p0 = params_ref[b, r, 0]
        p1 = params_ref[b, r, 1]
        p2 = params_ref[b, r, 2]
        p3 = params_ref[b, r, 3]
        out_ref[0, r] = depth * (p0 * x + p1 * y + p2) + p3


def backproject_depth(depth, inv_K, height, width, extrinsics_inv=None):
    B = depth.shape[0]
    depth4 = depth.astype(jnp.float32).reshape(B, 1, height, width)   # free reshape

    # Fold inv_K and extrinsics into a single (B, 4, 4) affine map (tiny XLA op).
    invk3 = inv_K.astype(jnp.float32)[:, :3, :3]
    K4 = jnp.zeros((B, 4, 4), jnp.float32)
    K4 = K4.at[:, :3, :3].set(invk3).at[:, 3, 3].set(1.0)
    if extrinsics_inv is None:
        P = K4
    else:
        P = jnp.einsum("bij,bjk->bik", extrinsics_inv.astype(jnp.float32), K4)

    th = _choose_tile_h(height, width)
    grid = (B, -(-height // th))

    out = pl.pallas_call(
        _backproject_kernel,
        out_shape=jax.ShapeDtypeStruct((B, 4, height, width), jnp.float32),
        grid_spec=pltpu.PrefetchScalarGridSpec(
            num_scalar_prefetch=0,
            grid=grid,
            in_specs=[
                # Folded (B,4,4) coefficients: whole array in SMEM, scalar reads.
                pl.BlockSpec(memory_space=pltpu.MemorySpace.SMEM),
                # Depth: (TH, W) row tiles on the natural image layout.
                pl.BlockSpec((1, 1, th, width), lambda b, t: (b, 0, t, 0)),
            ],
            out_specs=pl.BlockSpec((1, 4, th, width), lambda b, t: (b, 0, t, 0)),
        ),
        compiler_params=pltpu.CompilerParams(
            dimension_semantics=("parallel", "parallel"),
            vmem_limit_bytes=32 * 1024 * 1024,
        ),
    )(P, depth4)

    return out.reshape(B, 4, height * width)           # free reshape


def _reference(depth, inv_K, height, width, extrinsics_inv=None):
    # Mirrors the original torch forward (un-fused op order).
    B = depth.shape[0]
    HW = height * width
    xs, ys = np.meshgrid(range(width), range(height), indexing="xy")
    pix = np.concatenate(
        [np.stack([xs, ys], axis=0).reshape(2, HW).astype(np.float32),
         np.ones((1, HW), np.float32)], axis=0)
    pix = jnp.asarray(np.broadcast_to(pix, (B, 3, HW)).copy())
    ones = jnp.ones((B, 1, HW), jnp.float32)
    cam = jnp.einsum("bij,bjn->bin", inv_K[:, :3, :3].astype(jnp.float32), pix)
    cam = depth.reshape(B, 1, HW).astype(jnp.float32) * cam
    cam = jnp.concatenate([cam, ones], axis=1)
    if extrinsics_inv is not None:
        cam = jnp.einsum("bij,bjn->bin", extrinsics_inv.astype(jnp.float32), cam)
    return cam


if __name__ == "__main__":
    B, H, W = 2, 16, 24   # non-square to catch any x/y swap
    key = jax.random.PRNGKey(0)
    k_depth, k_invk, k_ext = jax.random.split(key, 3)

    depth = jax.random.uniform(k_depth, (B, 1, H, W), jnp.float32, 0.5, 5.0)
    # A plausible inverse-intrinsics-like 4x4 (only [:3,:3] matters) + noise.
    base_invK = jnp.eye(4, dtype=jnp.float32)
    base_invK = base_invK.at[0, 0].set(1.0 / 100.0).at[1, 1].set(1.0 / 100.0)
    base_invK = base_invK.at[0, 2].set(-W / 200.0).at[1, 2].set(-H / 200.0)
    inv_K = base_invK[None] + 0.01 * jax.random.normal(k_invk, (B, 4, 4), jnp.float32)
    extrinsics_inv = jnp.eye(4, dtype=jnp.float32)[None] + \
        0.05 * jax.random.normal(k_ext, (B, 4, 4), jnp.float32)

    out = jax.block_until_ready(backproject_depth(depth, inv_K, H, W, extrinsics_inv))
    ref = _reference(depth, inv_K, H, W, extrinsics_inv)
    assert out.shape == (B, 4, H * W)
    np.testing.assert_allclose(np.asarray(out), np.asarray(ref), rtol=1e-4, atol=1e-4)

    # Also exercise the no-extrinsics path (homogeneous row must be exactly 1).
    out2 = jax.block_until_ready(backproject_depth(depth, inv_K, H, W, None))
    ref2 = _reference(depth, inv_K, H, W, None)
    np.testing.assert_allclose(np.asarray(out2), np.asarray(ref2), rtol=1e-4, atol=1e-4)
    np.testing.assert_array_equal(np.asarray(out2[:, 3]), np.ones((B, H * W), np.float32))

    print("KERNEL_OK")
</pallas_src>

<mosaic_0001>
module attributes {stable_mosaic.version = 11 : i64} {
  func.func @_backproject_kernel(%arg0: i32, %arg1: i32, %arg2: memref<2x4x4xf32, #tpu.memory_space<smem>>, %arg3: memref<1x1x8x24xf32, #tpu.memory_space<vmem>>, %arg4: memref<1x4x8x24xf32, #tpu.memory_space<vmem>>) attributes {dimension_semantics = [#tpu.dimension_semantics<parallel>, #tpu.dimension_semantics<parallel>], iteration_bounds = array<i64: 2, 2>, scalar_prefetch = 0 : i64, scratch_operands = 0 : i64, tpu.core_type = #tpu.core_type<tc>, window_params = [{transform_indices = @transform_0, window_bounds = array<i64: 2, 4, 4>}, {transform_indices = @transform_1, window_bounds = array<i64: 1, 1, 8, 24>}, {transform_indices = @transform_2, window_bounds = array<i64: 1, 4, 8, 24>}]} {
    %c0 = arith.constant 0 : index
    %c0_0 = arith.constant 0 : index
    %c0_1 = arith.constant 0 : index
    %c0_2 = arith.constant 0 : index
    %0 = vector.load %arg3[%c0, %c0_0, %c0_1, %c0_2] : memref<1x1x8x24xf32, #tpu.memory_space<vmem>>, vector<1x1x8x24xf32>
    %1 = vector.shape_cast %0 : vector<1x1x8x24xf32> to vector<8x24xf32>
    %2 = tpu.iota {dimensions = array<i32: 1>} : vector<8x24xi32>
    %3 = arith.sitofp %2 : vector<8x24xi32> to vector<8x24xf32>
    %4 = tpu.iota {dimensions = array<i32: 0>} : vector<8x24xi32>
    %c8_i32 = arith.constant 8 : i32
    %5 = arith.muli %arg1, %c8_i32 : i32
    %6 = vector.broadcast %5 : i32 to vector<8x24xi32>
    %7 = arith.addi %4, %6 : vector<8x24xi32>
    %8 = arith.sitofp %7 : vector<8x24xi32> to vector<8x24xf32>
    %9 = arith.index_cast %arg0 : i32 to index
    %c0_3 = arith.constant 0 : index
    %c0_4 = arith.constant 0 : index
    %10 = memref.load %arg2[%9, %c0_3, %c0_4] : memref<2x4x4xf32, #tpu.memory_space<smem>>
    %11 = arith.index_cast %arg0 : i32 to index
    %c0_5 = arith.constant 0 : index
    %c1 = arith.constant 1 : index
    %12 = memref.load %arg2[%11, %c0_5, %c1] : memref<2x4x4xf32, #tpu.memory_space<smem>>
    %13 = arith.index_cast %arg0 : i32 to index
    %c0_6 = arith.constant 0 : index
    %c2 = arith.constant 2 : index
    %14 = memref.load %arg2[%13, %c0_6, %c2] : memref<2x4x4xf32, #tpu.memory_space<smem>>
    %15 = arith.index_cast %arg0 : i32 to index
    %c0_7 = arith.constant 0 : index
    %c3 = arith.constant 3 : index
    %16 = memref.load %arg2[%15, %c0_7, %c3] : memref<2x4x4xf32, #tpu.memory_space<smem>>
    %17 = vector.broadcast %10 : f32 to vector<8x24xf32>
    %18 = arith.mulf %17, %3 : vector<8x24xf32>
    %19 = vector.broadcast %12 : f32 to vector<8x24xf32>
    %20 = arith.mulf %19, %8 : vector<8x24xf32>
    %21 = arith.addf %18, %20 : vector<8x24xf32>
    %22 = vector.broadcast %14 : f32 to vector<8x24xf32>
    %23 = arith.addf %21, %22 : vector<8x24xf32>
    %24 = arith.mulf %1, %23 : vector<8x24xf32>
    %25 = vector.broadcast %16 : f32 to vector<8x24xf32>
    %26 = arith.addf %24, %25 : vector<8x24xf32>
    %c0_8 = arith.constant 0 : index
    %c0_9 = arith.constant 0 : index
    %c0_10 = arith.constant 0 : index
    %c0_11 = arith.constant 0 : index
    %27 = vector.load %arg4[%c0_8, %c0_9, %c0_10, %c0_11] : memref<1x4x8x24xf32, #tpu.memory_space<vmem>>, vector<1x1x8x24xf32>
    %28 = vector.shape_cast %27 : vector<1x1x8x24xf32> to vector<8x24xf32>
    %29 = vector.shape_cast %26 : vector<8x24xf32> to vector<1x1x8x24xf32>
    tpu.vector_store %arg4[%c0_8, %c0_9, %c0_10, %c0_11], %29 {strides = array<i32>} : memref<1x4x8x24xf32, #tpu.memory_space<vmem>>, vector<1x1x8x24xf32>,
    %30 = arith.index_cast %arg0 : i32 to index
    %c1_12 = arith.constant 1 : index
    %c0_13 = arith.constant 0 : index
    %31 = memref.load %arg2[%30, %c1_12, %c0_13] : memref<2x4x4xf32, #tpu.memory_space<smem>>
    %32 = arith.index_cast %arg0 : i32 to index
    %c1_14 = arith.constant 1 : index
    %c1_15 = arith.constant 1 : index
    %33 = memref.load %arg2[%32, %c1_14, %c1_15] : memref<2x4x4xf32, #tpu.memory_space<smem>>
    %34 = arith.index_cast %arg0 : i32 to index
    %c1_16 = arith.constant 1 : index
    %c2_17 = arith.constant 2 : index
    %35 = memref.load %arg2[%34, %c1_16, %c2_17] : memref<2x4x4xf32, #tpu.memory_space<smem>>
    %36 = arith.index_cast %arg0 : i32 to index
    %c1_18 = arith.constant 1 : index
    %c3_19 = arith.constant 3 : index
    %37 = memref.load %arg2[%36, %c1_18, %c3_19] : memref<2x4x4xf32, #tpu.memory_space<smem>>
    %38 = vector.broadcast %31 : f32 to vector<8x24xf32>
    %39 = arith.mulf %38, %3 : vector<8x24xf32>
    %40 = vector.broadcast %33 : f32 to vector<8x24xf32>
    %41 = arith.mulf %40, %8 : vector<8x24xf32>
    %42 = arith.addf %39, %41 : vector<8x24xf32>
    %43 = vector.broadcast %35 : f32 to vector<8x24xf32>
    %44 = arith.addf %42, %43 : vector<8x24xf32>
    %45 = arith.mulf %1, %44 : vector<8x24xf32>
    %46 = vector.broadcast %37 : f32 to vector<8x24xf32>
    %47 = arith.addf %45, %46 : vector<8x24xf32>
    %c0_20 = arith.constant 0 : index
    %c1_21 = arith.constant 1 : index
    %c0_22 = arith.constant 0 : index
    %c0_23 = arith.constant 0 : index
    %48 = vector.load %arg4[%c0_20, %c1_21, %c0_22, %c0_23] : memref<1x4x8x24xf32, #tpu.memory_space<vmem>>, vector<1x1x8x24xf32>
    %49 = vector.shape_cast %48 : vector<1x1x8x24xf32> to vector<8x24xf32>
    %50 = vector.shape_cast %47 : vector<8x24xf32> to vector<1x1x8x24xf32>
    tpu.vector_store %arg4[%c0_20, %c1_21, %c0_22, %c0_23], %50 {strides = array<i32>} : memref<1x4x8x24xf32, #tpu.memory_space<vmem>>, vector<1x1x8x24xf32>,
    %51 = arith.index_cast %arg0 : i32 to index
    %c2_24 = arith.constant 2 : index
    %c0_25 = arith.constant 0 : index
    %52 = memref.load %arg2[%51, %c2_24, %c0_25] : memref<2x4x4xf32, #tpu.memory_space<smem>>
    %53 = arith.index_cast %arg0 : i32 to index
    %c2_26 = arith.constant 2 : index
    %c1_27 = arith.constant 1 : index
    %54 = memref.load %arg2[%53, %c2_26, %c1_27] : memref<2x4x4xf32, #tpu.memory_space<smem>>
    %55 = arith.index_cast %arg0 : i32 to index
    %c2_28 = arith.constant 2 : index
    %c2_29 = arith.constant 2 : index
    %56 = memref.load %arg2[%55, %c2_28, %c2_29] : memref<2x4x4xf32, #tpu.memory_space<smem>>
    %57 = arith.index_cast %arg0 : i32 to index
    %c2_30 = arith.constant 2 : index
    %c3_31 = arith.constant 3 : index
    %58 = memref.load %arg2[%57, %c2_30, %c3_31] : memref<2x4x4xf32, #tpu.memory_space<smem>>
    %59 = vector.broadcast %52 : f32 to vector<8x24xf32>
    %60 = arith.mulf %59, %3 : vector<8x24xf32>
    %61 = vector.broadcast %54 : f32 to vector<8x24xf32>
    %62 = arith.mulf %61, %8 : vector<8x24xf32>
    %63 = arith.addf %60, %62 : vector<8x24xf32>
    %64 = vector.broadcast %56 : f32 to vector<8x24xf32>
    %65 = arith.addf %63, %64 : vector<8x24xf32>
    %66 = arith.mulf %1, %65 : vector<8x24xf32>
    %67 = vector.broadcast %58 : f32 to vector<8x24xf32>
    %68 = arith.addf %66, %67 : vector<8x24xf32>
    %c0_32 = arith.constant 0 : index
    %c2_33 = arith.constant 2 : index
    %c0_34 = arith.constant 0 : index
    %c0_35 = arith.constant 0 : index
    %69 = vector.load %arg4[%c0_32, %c2_33, %c0_34, %c0_35] : memref<1x4x8x24xf32, #tpu.memory_space<vmem>>, vector<1x1x8x24xf32>
    %70 = vector.shape_cast %69 : vector<1x1x8x24xf32> to vector<8x24xf32>
    %71 = vector.shape_cast %68 : vector<8x24xf32> to vector<1x1x8x24xf32>
    tpu.vector_store %arg4[%c0_32, %c2_33, %c0_34, %c0_35], %71 {strides = array<i32>} : memref<1x4x8x24xf32, #tpu.memory_space<vmem>>, vector<1x1x8x24xf32>,
    %72 = arith.index_cast %arg0 : i32 to index
    %c3_36 = arith.constant 3 : index
    %c0_37 = arith.constant 0 : index
    %73 = memref.load %arg2[%72, %c3_36, %c0_37] : memref<2x4x4xf32, #tpu.memory_space<smem>>
    %74 = arith.index_cast %arg0 : i32 to index
    %c3_38 = arith.constant 3 : index
    %c1_39 = arith.constant 1 : index
    %75 = memref.load %arg2[%74, %c3_38, %c1_39] : memref<2x4x4xf32, #tpu.memory_space<smem>>
    %76 = arith.index_cast %arg0 : i32 to index
    %c3_40 = arith.constant 3 : index
    %c2_41 = arith.constant 2 : index
    %77 = memref.load %arg2[%76, %c3_40, %c2_41] : memref<2x4x4xf32, #tpu.memory_space<smem>>
    %78 = arith.index_cast %arg0 : i32 to index
    %c3_42 = arith.constant 3 : index
    %c3_43 = arith.constant 3 : index
    %79 = memref.load %arg2[%78, %c3_42, %c3_43] : memref<2x4x4xf32, #tpu.memory_space<smem>>
    %80 = vector.broadcast %73 : f32 to vector<8x24xf32>
    %81 = arith.mulf %80, %3 : vector<8x24xf32>
    %82 = vector.broadcast %75 : f32 to vector<8x24xf32>
    %83 = arith.mulf %82, %8 : vector<8x24xf32>
    %84 = arith.addf %81, %83 : vector<8x24xf32>
    %85 = vector.broadcast %77 : f32 to vector<8x24xf32>
    %86 = arith.addf %84, %85 : vector<8x24xf32>
    %87 = arith.mulf %1, %86 : vector<8x24xf32>
    %88 = vector.broadcast %79 : f32 to vector<8x24xf32>
    %89 = arith.addf %87, %88 : vector<8x24xf32>
    %c0_44 = arith.constant 0 : index
    %c3_45 = arith.constant 3 : index
    %c0_46 = arith.constant 0 : index
    %c0_47 = arith.constant 0 : index
    %90 = vector.load %arg4[%c0_44, %c3_45, %c0_46, %c0_47] : memref<1x4x8x24xf32, #tpu.memory_space<vmem>>, vector<1x1x8x24xf32>
    %91 = vector.shape_cast %90 : vector<1x1x8x24xf32> to vector<8x24xf32>
    %92 = vector.shape_cast %89 : vector<8x24xf32> to vector<1x1x8x24xf32>
    tpu.vector_store %arg4[%c0_44, %c3_45, %c0_46, %c0_47], %92 {strides = array<i32>} : memref<1x4x8x24xf32, #tpu.memory_space<vmem>>, vector<1x1x8x24xf32>,
    return
  }
  func.func @transform_0(%arg0: i32, %arg1: i32) -> (i32, i32, i32) {
    %c0_i32 = arith.constant 0 : i32
    %c0_i32_0 = arith.constant 0 : i32
    %c0_i32_1 = arith.constant 0 : i32
    %c0_i32_2 = arith.constant 0 : i32
    return %c0_i32, %c0_i32_0, %c0_i32_1 : i32, i32, i32
  }
  func.func @transform_1(%arg0: i32, %arg1: i32) -> (i32, i32, i32, i32) {
    %c0_i32 = arith.constant 0 : i32
    %c0_i32_0 = arith.constant 0 : i32
    %c0_i32_1 = arith.constant 0 : i32
    return %arg0, %c0_i32, %arg1, %c0_i32_0 : i32, i32, i32, i32
  }
  func.func @transform_2(%arg0: i32, %arg1: i32) -> (i32, i32, i32, i32) {
    %c0_i32 = arith.constant 0 : i32
    %c0_i32_0 = arith.constant 0 : i32
    %c0_i32_1 = arith.constant 0 : i32
    return %arg0, %c0_i32, %arg1, %c0_i32_0 : i32, i32, i32, i32
  }
}

</mosaic_0001>

<llo_original>
// kernel: tpu_custom_call.1
$region0: #{tpu_custom_call.1}
  #allocation0 [shape = 'u32[]', space=smem, size = 0x4, offset = 0x4, fixed_abs, tag = 'smem constant byte address 0x4 - core index']
  #allocation1 [shape = 'u32[144,128]{1,0:T(1,128)}', space=vmem, size = 0x12000, scoped, tag = 'internal scratch']
  %s0 = inlined_call_operand.hbm [shape: f32[2,4,4], index: 0, kind: input, shape index: {}]
  %s1 = inlined_call_operand.hbm [shape: f32[2,1,16,24], index: 1, kind: input, shape index: {}]
  %s2 = inlined_call_operand.hbm [shape: f32[2,4,16,24], index: 2, kind: output, shape index: {}]
  %s3 = sld [smem:[#allocation0]]
  $region49: #{tpu_custom_call.1} parent=0
    _
  %s5 = ssub.s32 1, %s3
  %s6 = scalar_select 0, %s5, %s3
  $region1: #{tpu_custom_call.1} parent=0
    #allocation2 [shape = 'u8[4096]{0}', space=smem, size = 0x1000, scoped, tag = 'input window, operand 0, single buffered']
    #allocation3 [shape = 's32[2]{0}', space=sflag, size = 0x8, scoped, tag = 'scoped memory for tpu_custom_call.1']
    #allocation4 [shape = 's32[2]{0}', space=sflag, size = 0x8, scoped, tag = 'scoped memory for tpu_custom_call.1']
    #allocation5 [shape = 's32[2]{0}', space=sflag, size = 0x8, scoped, tag = 'scoped memory for tpu_custom_call.1']
    #allocation6 [shape = 'u8[8192]{0}', space=vmem, size = 0x2000, scoped, tag = 'input window, operand 1']
    #allocation7 [shape = 'u8[32768]{0}', space=vmem, size = 0x8000, scoped, tag = 'output window, operand 0']
    %7 = vsyncpa [#allocation5], 0
    %8 = vsyncpa [#allocation3], 0
    %s9 = scalar_lea.sflag [#allocation3], 1
    %10 = vsyncpa %s9, 0
    %11 = vsyncpa [#allocation4], 0
    %s12 = scalar_lea.sflag [#allocation4], 1
    %13 = vsyncpa %s12, 0
    loop: start=0, step=1, limit=6
    $region2: #{tpu_custom_call.1} parent=1 // loop_pre_header
      _
    $region3: #{tpu_custom_call.1} parent=1 // loop_header
      %s15 = sphi 0, %s19
      %p16 = scmp.ge.s32.totalorder %s15, 6
      %s22 = sphi 0, %s34
      %s23 = sphi 0, %s30
      %s24 = sphi 0, %s22
      %s25 = sphi 0, %s23
      %s26 = sphi 0, %s24
      %s27 = sphi 0, %s25
      %s35 = sphi 0, %s35
      %s37 = sphi 0, %s35
      %s38 = sphi 0, %s37
      %s52 = sphi 0, %s38
      %s60 = sphi 0, %s62
      %s63 = sphi 0, %s60
      %s64 = sphi 0, %s63
      %s80 = sphi 0, %s64
      %s88 = sphi 0, %s90
      %s91 = sphi 0, %s88
      %s92 = sphi 0, %s91
      %s108 = sphi 0, %s92
    $region4: #{tpu_custom_call.1} parent=1 // loop_header_branch
      %18 = sbr.rel (%p16) target = $region8
    $region5: #{tpu_custom_call.1} parent=1 // loop_body
      %s20 = ssub.s32 %s15, 1
      %s21 = ssub.s32 %s15, 2
      %s28 = sadd.s32 1, %s23
      %p29 = scmp.ge.s32.totalorder %s28, 2
      %s30 = scalar_select %p29, 0, %s28
      %s31 = sadd.s32 1, %s22
      %s32 = scalar_select %p29, %s31, %s22
      %p33 = scmp.ge.s32.totalorder %s32, 2
      %s34 = scalar_select %p33, 0, %s32
      %s36 = sadd.s32 %s35, 1
      %p39 = scmp.eq.s32.totalorder %s15, 3
      %p40 = scmp.ne.s32.totalorder %s35, %s37
      %p41 = scmp.eq.s32.totalorder %s15, 0
      %p42 = por %p40, %p41
      %p43 = scmp.ne.s32.totalorder %s35, %s37
      %p44 = scmp.eq.s32.totalorder %s20, 3
      %p45 = por %p43, %p44
      %p46 = scmp.ne.s32.totalorder %s37, %s38
      %p47 = scmp.eq.s32.totalorder %s20, 0
      %p48 = por %p46, %p47
      %p49 = scmp.ne.s32.totalorder %s37, %s38
      %p50 = scmp.eq.s32.totalorder %s21, 3
      %p51 = por %p49, %p50
      %p53 = scmp.ne.s32.totalorder %s38, %s52
      %p54 = scmp.eq.s32.totalorder %s21, 0
      %p55 = por %p53, %p54
      %s56 = ssub.s32 %s22, %s34
      %s57 = ssub.s32 %s23, %s30
      %s58 = sor.u32 %s56, %s57
      %p59 = scmp.eq.s32.totalorder %s58, 0
      %s61 = sadd.s32 %s60, 1
      %s62 = scalar_select %p59, %s60, %s61
      %p65 = pneg %p59
      %p66 = scmp.eq.s32.totalorder %s15, 3
      %p67 = por %p65, %p66
      %p68 = scmp.ne.s32.totalorder %s60, %s63
      %p69 = scmp.eq.s32.totalorder %s15, 0
      %p70 = por %p68, %p69
      %p71 = scmp.ne.s32.totalorder %s60, %s63
      %p72 = scmp.eq.s32.totalorder %s20, 3
      %p73 = por %p71, %p72
      %p74 = scmp.ne.s32.totalorder %s63, %s64
      %p75 = scmp.eq.s32.totalorder %s20, 0
      %p76 = por %p74, %p75
      %p77 = scmp.ne.s32.totalorder %s63, %s64
      %p78 = scmp.eq.s32.totalorder %s21, 3
      %p79 = por %p77, %p78
      %p81 = scmp.ne.s32.totalorder %s64, %s80
      %p82 = scmp.eq.s32.totalorder %s21, 0
      %p83 = por %p81, %p82
      %s84 = ssub.s32 %s22, %s34
      %s85 = ssub.s32 %s23, %s30
      %s86 = sor.u32 %s84, %s85
      %p87 = scmp.eq.s32.totalorder %s86, 0
      %s89 = sadd.s32 %s88, 1
      %s90 = scalar_select %p87, %s88, %s89
      %p93 = pneg %p87
      %p94 = scmp.eq.s32.totalorder %s15, 3
      %p95 = por %p93, %p94
      %p96 = scmp.ne.s32.totalorder %s88, %s91
      %p97 = scmp.eq.s32.totalorder %s15, 0
      %p98 = por %p96, %p97
      %p99 = scmp.ne.s32.totalorder %s88, %s91
      %p100 = scmp.eq.s32.totalorder %s20, 3
      %p101 = por %p99, %p100
      %p102 = scmp.ne.s32.totalorder %s91, %s92
      %p103 = scmp.eq.s32.totalorder %s20, 0
      %p104 = por %p102, %p103
      %p105 = scmp.ne.s32.totalorder %s91, %s92
      %p106 = scmp.eq.s32.totalorder %s21, 3
      %p107 = por %p105, %p106
      %p109 = scmp.ne.s32.totalorder %s92, %s108
      %p110 = scmp.eq.s32.totalorder %s21, 0
      %p111 = por %p109, %p110
      %p112 = scmp.le.s32.totalorder 1, %s15
      %p113 = scmp.lt.s32.totalorder %s15, 5
      %p114 = pnand %p112, %p113
      %p115 = pneg %p114
      // Predicated region
      $region9: #{tpu_custom_call.1} parent=5 // pred_check
        _
      $region10: #{tpu_custom_call.1} parent=5 // pred_check_branch
        %117 = sbr.rel (%p114) target = $region12
      $region11: #{tpu_custom_call.1} parent=5 // pred_region
        %s118 = ssub.s32 %s15, 1
        // Predicated region
        $region13: #{tpu_custom_call.1} parent=11 // pred_check
          %p119 = pneg %p48
        $region14: #{tpu_custom_call.1} parent=11 // pred_check_branch
          %121 = sbr.rel (%p119) target = $region16
        $region15: #{tpu_custom_call.1} parent=11 // pred_region
          %s123 = ssub.s32 128, 128
          %124 = vsyncadd [#allocation5], %s123
          %129 = dma.hbm_to_smem %s0, 128, [#allocation2], [#allocation5], 64, 64, 4
        $region16: #{tpu_custom_call.1} parent=11 // pred_fallthru
          _
      $region12: #{tpu_custom_call.1} parent=5 // pred_fallthru
        _
      %p130 = scmp.lt.s32.totalorder %s15, 4
      // Predicated region
      $region17: #{tpu_custom_call.1} parent=5 // pred_check
        %p131 = pneg %p130
      $region18: #{tpu_custom_call.1} parent=5 // pred_check_branch
        %133 = sbr.rel (%p131) target = $region20
      $region19: #{tpu_custom_call.1} parent=5 // pred_region
        // Predicated region
        $region21: #{tpu_custom_call.1} parent=19 // pred_check
          %p134 = pneg %p70
        $region22: #{tpu_custom_call.1} parent=19 // pred_check_branch
          %136 = sbr.rel (%p134) target = $region24
        $region23: #{tpu_custom_call.1} parent=19 // pred_region
          %s137 = sand.u32 %s60, 1
          %s138 = scalar_lea.sflag [#allocation3], %s137
          %s139 = sand.u32 %s60, 1
          %s140 = smul.addr %s139, 8
          %s141 = scalar_lea.vmem [#allocation6], %s140
          %s143 = ssub.s32 128, 128
          %144 = vsyncadd %s138, %s143
          %s145 = smul.addr %s22, 2
          %s146 = sadd.s32 %s23, %s145
          %s147 = smul.addr %s146, 128
          %s148 = scalar_lea.hbm %s1, %s147
          %s150 = sshll.u32 %s141, 4
          %s151 = int_to_ptr.vmem [resolvable:$true] %s150
          %153 = dma.hbm_to_vmem [thread:$0]  %s148, 128, %s151, %s138
        $region24: #{tpu_custom_call.1} parent=19 // pred_fallthru
          _
      $region20: #{tpu_custom_call.1} parent=5 // pred_fallthru
        _
      %p154 = scmp.le.s32.totalorder 1, %s15
      %p155 = scmp.lt.s32.totalorder %s15, 5
      %p156 = pnand %p154, %p155
      %p157 = pneg %p156
      // Predicated region
      $region25: #{tpu_custom_call.1} parent=5 // pred_check
        _
      $region26: #{tpu_custom_call.1} parent=5 // pred_check_branch
        %159 = sbr.rel (%p156) target = $region28
      $region27: #{tpu_custom_call.1} parent=5 // pred_region
        %s160 = ssub.s32 %s15, 1
        // Predicated region
        $region29: #{tpu_custom_call.1} parent=27 // pred_check
          %p161 = pneg %p48
        $region30: #{tpu_custom_call.1} parent=27 // pred_check_branch
          %163 = sbr.rel (%p161) target = $region32
        $region31: #{tpu_custom_call.1} parent=27 // pred_region
          %164 = dma.done [#allocation5], 128
        $region32: #{tpu_custom_call.1} parent=27 // pred_fallthru
          _
        %s165 = sand.u32 %s63, 1
        %s166 = scalar_lea.sflag [#allocation3], %s165
        %s167 = sand.u32 %s63, 1
        %s168 = smul.addr %s167, 8
        %s169 = scalar_lea.vmem [#allocation6], %s168
        // Predicated region
        $region33: #{tpu_custom_call.1} parent=27 // pred_check
          %p170 = pneg %p76
        $region34: #{tpu_custom_call.1} parent=27 // pred_check_branch
          %172 = sbr.rel (%p170) target = $region36
        $region35: #{tpu_custom_call.1} parent=27 // pred_region
          %173 = dma.done %s166, 128
        $region36: #{tpu_custom_call.1} parent=27 // pred_fallthru
          _
        %174 = sfence
        %p175 = pneg %p48
        %p176 = pneg %p45
        %s177 = sand.u32 %s63, 1
        %s178 = scalar_lea.sflag [#allocation3], %s177
        %s179 = sand.u32 %s63, 1
        %s180 = smul.addr %s179, 8
        %s181 = scalar_lea.vmem [#allocation6], %s180
        %p182 = pneg %p76
        %p183 = pneg %p73
        %p184 = pneg %p104
        %p185 = pneg %p101
        %s186 = sand.u32 %s91, 1
        %s187 = scalar_lea.sflag [#allocation4], %s186
        %s188 = sand.u32 %s91, 1
        %s189 = smul.addr %s188, 32
        %s190 = scalar_lea.vmem [#allocation7], %s189
        %v191 = vld [vmem:[%s169] sm:$0xff]
        %v192 = vlaneseq
        %v193 = vand.u32 %v192, 127
        %v194 = vcvt.s32.f32 %v193
        %v195 = vlaneseq
        %v196 = vshrl.u32 %v195, 7
        %s197 = smul.u32 %s25, 8
        %v198 = vstv %s197
        %v199 = vadd.s32 %v196, %v198
        %v200 = vcvt.s32.f32 %v199
        %s201 = smul.u32 %s24, 4
        %s202 = smul.u32 %s201, 128
        %s203 = sld [smem:[#allocation2 + %s202]]
        %s204 = sadd.s32 %s202, 1
        %s205 = sld [smem:[#allocation2 + %s204]]
        %s206 = sadd.s32 %s202, 2
        %s207 = sld [smem:[#allocation2 + %s206]]
        %s208 = sadd.s32 %s202, 3
        %s209 = sld [smem:[#allocation2 + %s208]]
        %v210 = vstv %s203
        %v211 = vmul.f32 %v210, %v194
        %v212 = vstv %s205
        %v213 = vmul.f32 %v212, %v200
        %v214 = vadd.f32 %v211, %v213
        %v215 = vstv %s207
        %v216 = vadd.f32 %v214, %v215
        %v217 = vmul.f32 %v191, %v216
        %v218 = vstv %s209
        %v219 = vadd.f32 %v217, %v218
        %vm220 = vcmask 195584
        %221 = vst.msk [vmem:[%s190] sm:$0xff] %vm220, %v219
        %s222 = sadd.s32 1, %s201
        %s223 = smul.u32 %s222, 128
        %s224 = sld [smem:[#allocation2 + %s223]]
        %s225 = sadd.s32 %s223, 1
        %s226 = sld [smem:[#allocation2 + %s225]]
        %s227 = sadd.s32 %s223, 2
        %s228 = sld [smem:[#allocation2 + %s227]]
        %s229 = sadd.s32 %s223, 3
        %s230 = sld [smem:[#allocation2 + %s229]]
        %v231 = vstv %s224
        %v232 = vmul.f32 %v231, %v194
        %v233 = vstv %s226
        %v234 = vmul.f32 %v233, %v200
        %v235 = vadd.f32 %v232, %v234
        %v236 = vstv %s228
        %v237 = vadd.f32 %v235, %v236
        %v238 = vmul.f32 %v191, %v237
        %v239 = vstv %s230
        %v240 = vadd.f32 %v238, %v239
        %s241 = scalar_lea.vmem %s190, 8 [#allocation7]
        %242 = vst.msk [vmem:[%s241] sm:$0xff] %vm220, %v240
        %s243 = sadd.s32 2, %s201
        %s244 = smul.u32 %s243, 128
        %s245 = sld [smem:[#allocation2 + %s244]]
        %s246 = sadd.s32 %s244, 1
        %s247 = sld [smem:[#allocation2 + %s246]]
        %s248 = sadd.s32 %s244, 2
        %s249 = sld [smem:[#allocation2 + %s248]]
        %s250 = sadd.s32 %s244, 3
        %s251 = sld [smem:[#allocation2 + %s250]]
        %v252 = vstv %s245
        %v253 = vmul.f32 %v252, %v194
        %v254 = vstv %s247
        %v255 = vmul.f32 %v254, %v200
        %v256 = vadd.f32 %v253, %v255
        %v257 = vstv %s249
        %v258 = vadd.f32 %v256, %v257
        %v259 = vmul.f32 %v191, %v258
        %v260 = vstv %s251
        %v261 = vadd.f32 %v259, %v260
        %s262 = scalar_lea.vmem %s190, 16 [#allocation7]
        %263 = vst.msk [vmem:[%s262] sm:$0xff] %vm220, %v261
        %s264 = sadd.s32 3, %s201
        %s265 = smul.u32 %s264, 128
        %s266 = sld [smem:[#allocation2 + %s265]]
        %s267 = sadd.s32 %s265, 1
        %s268 = sld [smem:[#allocation2 + %s267]]
        %s269 = sadd.s32 %s265, 2
        %s270 = sld [smem:[#allocation2 + %s269]]
        %s271 = sadd.s32 %s265, 3
        %s272 = sld [smem:[#allocation2 + %s271]]
        %v273 = vstv %s266
        %v274 = vmul.f32 %v273, %v194
        %v275 = vstv %s268
        %v276 = vmul.f32 %v275, %v200
        %v277 = vadd.f32 %v274, %v276
        %v278 = vstv %s270
        %v279 = vadd.f32 %v277, %v278
        %v280 = vmul.f32 %v191, %v279
        %v281 = vstv %s272
        %v282 = vadd.f32 %v280, %v281
        %s283 = scalar_lea.vmem %s190, 24 [#allocation7]
        %284 = vst.msk [vmem:[%s283] sm:$0xff] %vm220, %v282
        %s285 = sand.u32 %s91, 1
        %s286 = scalar_lea.sflag [#allocation4], %s285
        %s287 = sand.u32 %s91, 1
        %s288 = smul.addr %s287, 32
        %s289 = scalar_lea.vmem [#allocation7], %s288
        // Predicated region
        $region37: #{tpu_custom_call.1} parent=27 // pred_check
          %p290 = pneg %p101
        $region38: #{tpu_custom_call.1} parent=27 // pred_check_branch
          %292 = sbr.rel (%p290) target = $region40
        $region39: #{tpu_custom_call.1} parent=27 // pred_region
          %s294 = ssub.s32 512, 512
          %295 = vsyncadd %s286, %s294
          %s296 = smul.addr %s24, 8
          %s297 = sadd.s32 %s25, %s296
          %s298 = smul.addr %s297, 128
          %s299 = scalar_lea.hbm %s2, %s298
          %s300 = sshll.u32 %s289, 4
          %s301 = int_to_ptr.vmem [resolvable:$true] %s300
          %306 = dma.vmem_to_hbm [thread:$0]  %s301, 512, %s299, %s286, 128, 256, 8
        $region40: #{tpu_custom_call.1} parent=27 // pred_fallthru
          _
      $region28: #{tpu_custom_call.1} parent=5 // pred_fallthru
        _
      %p307 = scmp.le.s32.totalorder 2, %s15
      // Predicated region
      $region41: #{tpu_custom_call.1} parent=5 // pred_check
        %p308 = pneg %p307
      $region42: #{tpu_custom_call.1} parent=5 // pred_check_branch
        %310 = sbr.rel (%p308) target = $region44
      $region43: #{tpu_custom_call.1} parent=5 // pred_region
        %s311 = ssub.s32 %s15, 2
        // Predicated region
        $region45: #{tpu_custom_call.1} parent=43 // pred_check
          %p312 = pneg %p107
        $region46: #{tpu_custom_call.1} parent=43 // pred_check_branch
          %314 = sbr.rel (%p312) target = $region48
        $region47: #{tpu_custom_call.1} parent=43 // pred_region
          %s315 = sand.u32 %s92, 1
          %s316 = scalar_lea.sflag [#allocation4], %s315
          %s317 = sand.u32 %s92, 1
          %s318 = smul.addr %s317, 32
          %s319 = scalar_lea.vmem [#allocation7], %s318
          %320 = dma.done %s316, 512
        $region48: #{tpu_custom_call.1} parent=43 // pred_fallthru
          _
      $region44: #{tpu_custom_call.1} parent=5 // pred_fallthru
        _
    $region6: #{tpu_custom_call.1} parent=1 // loop_footer
      %s19 = sadd.s32 1, %s15
    $region7: #{tpu_custom_call.1} parent=1 // loop_footer_branch
      %14 = sbr.rel target = $region3
    $region8: #{tpu_custom_call.1} parent=1 // loop_exit
      _
    %321 = vsyncpa [#allocation3], 1
    %s322 = scalar_lea.sflag [#allocation3], 1
    %323 = vsyncpa %s322, 1
    %324 = vsyncpa [#allocation4], 1
    %s325 = scalar_lea.sflag [#allocation4], 1
    %326 = vsyncpa %s325, 1
    %327 = vsyncpa [#allocation5], 1
    %s328 = scalar_lea.sflag [#allocation5], 1
    %329 = vsyncpa %s328, 1

</llo_original>
